<compile_context>
chip_gen: v6e
topology: v6e:2x2x1
jax: 0.10.0
libtpu: 0.0.40
codegen_flags: <defaults>
</compile_context>

<pallas_src>
import jax
import jax.numpy as jnp
from jax.experimental import pallas as pl
from jax.experimental.pallas import tpu as pltpu

LANE_CANDIDATES = (1024, 512, 256, 128)   # lane width of the flattened slab
TARGET_BLOCK_BYTES = 4 * 1024 * 1024      # ~4 MiB (f32 basis) per streamed array / block
RESIDENT_BG_MAX_INNER = 131072            # keep bg resident in VMEM up to this many elems


def _round_up(x, m):
    return ((x + m - 1) // m) * m


# ----------------------------------------------------------------------------- kernels
def _scmos_scalar_bg_kernel(scalars_ref, x_ref, conc_ref):
    # scalars_ref (SMEM, f32[3]): [background, baseline, theta]
    bg = scalars_ref[0]
    baseline = scalars_ref[1]
    theta = scalars_ref[2]
    x = x_ref[...].astype(jnp.float32)            # in-kernel cast: stream native dtype
    xb = jnp.maximum(x + bg, 1.0)                 # x_sim + background, clamp_(1.0)
    conc_ref[...] = (xb - baseline) / theta


def _scmos_tensor_bg_kernel(scalars_ref, x_ref, bg_ref, conc_ref):
    # scalars_ref (SMEM, f32[2]): [baseline, theta]
    # bg_ref is either a streamed full-size block (same shape as x block) or a
    # small resident (1, inner) block; jnp broadcasting covers both.
    baseline = scalars_ref[0]
    theta = scalars_ref[1]
    xb = jnp.maximum(
        x_ref[...].astype(jnp.float32) + bg_ref[...].astype(jnp.float32), 1.0)
    conc_ref[...] = (xb - baseline) / theta


# ----------------------------------------------------------------------------- helpers
def _pick_block_rows(rows, lane_w, row_mult):
    """~TARGET_BLOCK_BYTES per f32 array per block; >=2 grid steps when possible."""
    if rows <= row_mult:
        return rows                                    # full extent: always a legal block
    target = max(row_mult,
                 ((TARGET_BLOCK_BYTES // 4 // lane_w) // row_mult) * row_mult)
    # Guarantee >= 2 grid steps so ("parallel",) can shard across v7x's 2 TCs.
    half = _round_up((rows + 1) // 2, row_mult)
    return min(target, half)


def _compiler_params(block_rows, lane_w, streamed_itemsizes, resident_bytes=0):
    blk = block_rows * lane_w
    need = 2 * blk * sum(streamed_itemsizes) + 2 * resident_bytes + (8 << 20)
    vmem = int(min(max(need, 32 << 20), 48 << 20))     # v5e default scoped is 16 MiB
    return pltpu.CompilerParams(dimension_semantics=("parallel",),
                                vmem_limit_bytes=vmem)


def _suffix_split(x_shape, bg_shape):
    """Return (outer, inner) if bg broadcasts onto x purely over leading axes."""
    nd = len(x_shape)
    if len(bg_shape) > nd:
        return None
    bga = (1,) * (nd - len(bg_shape)) + tuple(bg_shape)
    k = nd
    for i, d in enumerate(bga):
        if d != 1:
            k = i
            break
    if tuple(bga[k:]) != tuple(x_shape[k:]):
        return None
    inner = 1
    for d in x_shape[k:]:
        inner *= d
    outer = 1
    for d in x_shape[:k]:
        outer *= d
    return outer, inner


# ----------------------------------------------------------------------------- wrapper
def scmos_forward(x_sim, background, theta, baseline, *, donate_x=False):
    """Returns (concentration, rate) of the Gamma distribution.

    x_sim:      (BS, C, H, W, D) float (any float dtype; cast to f32 in-kernel)
    background: scalar, or tensor broadcastable to x_sim
    theta:      scalar parameter
    baseline:   scalar buffer
    donate_x:   alias x_sim's buffer to the output (only if x_sim is f32 and
                dead after this call)
    Concentration is float32 (matches torch promotion with the f32 theta/baseline).

    TODO(synk): torch returns a D.Gamma object (sampling / log_prob); here we
    return its parameters, which fully define it.  The biggest remaining win
    is fusing this bandwidth-bound pass into the consumer (e.g. the Gamma
    log_prob / loss kernel) so `concentration` never round-trips HBM.
    """
    x = jnp.asarray(x_sim)
    bg = jnp.asarray(background)
    orig_shape = x.shape
    total = x.size

    theta_f = jnp.asarray(theta, jnp.float32).reshape(())
    baseline_f = jnp.asarray(baseline, jnp.float32).reshape(())
    rate = 1.0 / theta_f                           # scalar Gamma rate
    out_dtype = jnp.float32

    def _jnp_ref(xv, bgv):                         # tiny tails / degenerate sizes
        xb = jnp.maximum(xv.astype(jnp.float32) + bgv.astype(jnp.float32), 1.0)
        return (xb - baseline_f) / theta_f

    if total == 0:
        return jnp.zeros(orig_shape, out_dtype), rate

    scalar_bg = bg.size == 1
    resident = None
    if not scalar_bg:
        split = _suffix_split(orig_shape, bg.shape)
        if (split is not None and split[1] % 128 == 0
                and split[1] <= RESIDENT_BG_MAX_INNER and split[1] < total):
            resident = split                       # (outer, inner): keep bg in VMEM
        elif bg.shape != orig_shape:
            # TODO(synk): non-suffix broadcast patterns (e.g. per-channel only)
            # still materialize a full-size background stream.
            bg = jnp.broadcast_to(bg, orig_shape)

    x_item = x.dtype.itemsize
    alias = {1: 0} if (donate_x and x.dtype == out_dtype) else {}

    # ---------------- resident (small, broadcastable) background ------------------
    if resident is not None:
        outer, inner = resident
        row_mult = max(8, 32 // x_item)
        rows, lane_w = outer, inner
        x2d = x.reshape(rows, lane_w)              # contiguous reshape: free
        bg2d = bg.reshape(1, lane_w)
        block_rows = _pick_block_rows(rows, lane_w, row_mult)
        data_spec = pl.BlockSpec((block_rows, lane_w), lambda i: (i, 0))
        scalars = jnp.stack([baseline_f, theta_f])
        conc2d = pl.pallas_call(
            _scmos_tensor_bg_kernel,
            out_shape=jax.ShapeDtypeStruct((rows, lane_w), out_dtype),
            grid_spec=pltpu.PrefetchScalarGridSpec(
                num_scalar_prefetch=0,
                grid=(pl.cdiv(rows, block_rows),),
                in_specs=[
                    pl.BlockSpec(memory_space=pltpu.SMEM),        # [baseline, theta]
                    data_spec,                                    # x_sim slab (streamed)
                    pl.BlockSpec((1, lane_w), lambda i: (0, 0)),  # bg: resident block
                ],
                out_specs=data_spec,
            ),
            compiler_params=_compiler_params(
                block_rows, lane_w, (x_item, 4),
                resident_bytes=inner * bg.dtype.itemsize),
            input_output_aliases=alias,
        )(scalars, x2d, bg2d)
        return conc2d.reshape(orig_shape), rate

    # ---------------- scalar or full-size background ------------------------------
    if scalar_bg:
        row_mult = max(8, 32 // x_item)
    else:
        row_mult = max(8, 32 // x_item, 32 // bg.dtype.itemsize)

    lane_w = next((lw for lw in LANE_CANDIDATES if total % lw == 0), 128)
    rows = total // lane_w
    main = rows * lane_w
    tail = total - main

    x_flat = x.reshape(-1)
    bg_flat = None if scalar_bg else bg.reshape(-1)
    bg_scalar_f = bg.astype(jnp.float32).reshape(()) if scalar_bg else None

    if rows == 0:
        # Fewer than 128 elements: a kernel launch isn't worth it.
        bgv = bg_scalar_f if scalar_bg else bg_flat
        return _jnp_ref(x_flat, bgv).reshape(orig_shape), rate

    x_main = (x_flat.reshape(rows, lane_w) if tail == 0
              else x_flat[:main].reshape(rows, lane_w))
    block_rows = _pick_block_rows(rows, lane_w, row_mult)
    data_spec = pl.BlockSpec((block_rows, lane_w), lambda i: (i, 0))
    grid = (pl.cdiv(rows, block_rows),)
    out_shape = jax.ShapeDtypeStruct((rows, lane_w), out_dtype)

    if scalar_bg:
        scalars = jnp.stack([bg_scalar_f, baseline_f, theta_f])
        conc_main = pl.pallas_call(
            _scmos_scalar_bg_kernel,
            out_shape=out_shape,
            grid_spec=pltpu.PrefetchScalarGridSpec(
                num_scalar_prefetch=0,
                grid=grid,
                in_specs=[
                    pl.BlockSpec(memory_space=pltpu.SMEM),   # [bg, baseline, theta]
                    data_spec,                               # x_sim slab
                ],
                out_specs=data_spec,
            ),
            compiler_params=_compiler_params(block_rows, lane_w, (x_item, 4)),
            input_output_aliases=alias,
        )(scalars, x_main)
    else:
        bg_item = bg.dtype.itemsize
        bg_main = (bg_flat.reshape(rows, lane_w) if tail == 0
                   else bg_flat[:main].reshape(rows, lane_w))
        scalars = jnp.stack([baseline_f, theta_f])
        conc_main = pl.pallas_call(
            _scmos_tensor_bg_kernel,
            out_shape=out_shape,
            grid_spec=pltpu.PrefetchScalarGridSpec(
                num_scalar_prefetch=0,
                grid=grid,
                in_specs=[
                    pl.BlockSpec(memory_space=pltpu.SMEM),   # [baseline, theta]
                    data_spec,                               # x_sim slab
                    data_spec,                               # background slab
                ],
                out_specs=data_spec,
            ),
            compiler_params=_compiler_params(block_rows, lane_w, (x_item, bg_item, 4)),
            input_output_aliases=alias,
        )(scalars, x_main, bg_main)

    if tail == 0:
        return conc_main.reshape(orig_shape), rate

    # TODO(synk): element counts not divisible by 128 pay one extra pass for the
    # prefix slice + output concatenate; all common image shapes avoid this path.
    x_tail = x_flat[main:]
    bg_tail = bg_scalar_f if scalar_bg else bg_flat[main:]
    conc_tail = _jnp_ref(x_tail, bg_tail)
    conc = jnp.concatenate([conc_main.reshape(-1), conc_tail]).reshape(orig_shape)
    return conc, rate


if __name__ == "__main__":
    key = jax.random.PRNGKey(0)
    k1, k2, k3, k4 = jax.random.split(key, 4)

    # Shape per docstring: (BS, C, H, W, D)
    BS, C, H, W, D = 2, 4, 16, 16, 8
    theta = 3.0       # nn.Parameter initial value
    baseline = 0.01   # registered buffer

    x_f32 = jax.random.uniform(k1, (BS, C, H, W, D), jnp.float32) * 5.0
    bg_full = jax.random.uniform(k2, (BS, C, H, W, D), jnp.float32) * 2.0
    bg_map = jax.random.uniform(k3, (1, 1, H, W, D), jnp.float32) * 2.0
    x_bf16 = (jax.random.uniform(k4, (BS, C, H, W, D), jnp.float32) * 5.0
              ).astype(jnp.bfloat16)
    bg_scalar = 0.5

    def ref(xv, bgv):
        xb = jnp.maximum(xv.astype(jnp.float32) + jnp.asarray(bgv).astype(jnp.float32), 1.0)
        return (xb - baseline) / theta

    # --- full-size tensor background (streamed) ---
    conc, rate = scmos_forward(x_f32, bg_full, theta, baseline)
    conc = jax.block_until_ready(conc)
    assert conc.shape == (BS, C, H, W, D) and conc.dtype == jnp.float32
    assert jnp.allclose(conc, ref(x_f32, bg_full), atol=1e-5, rtol=1e-5)
    assert jnp.allclose(rate, 1.0 / theta)

    # --- scalar background (SMEM, no HBM background stream) ---
    conc, rate = scmos_forward(x_f32, bg_scalar, theta, baseline)
    conc = jax.block_until_ready(conc)
    assert jnp.allclose(conc, ref(x_f32, bg_scalar), atol=1e-5, rtol=1e-5)
    assert jnp.allclose(rate, 1.0 / theta)

    # --- broadcastable (per-pixel map) background kept resident in VMEM ---
    conc, rate = scmos_forward(x_f32, bg_map, theta, baseline)
    conc = jax.block_until_ready(conc)
    assert jnp.allclose(conc, ref(x_f32, bg_map), atol=1e-5, rtol=1e-5)

    # --- bf16 input: cast happens in-kernel, half the input bytes ---
    conc, rate = scmos_forward(x_bf16, bg_scalar, theta, baseline)
    conc = jax.block_until_ready(conc)
    assert conc.dtype == jnp.float32
    assert jnp.allclose(conc, ref(x_bf16, bg_scalar), atol=1e-5, rtol=1e-5)

    # --- odd element count (not divisible by 128): prefix kernel + jnp tail ---
    x_odd = jax.random.uniform(k1, (2, 3, 7, 5, 3), jnp.float32) * 5.0
    conc, rate = scmos_forward(x_odd, bg_scalar, theta, baseline)
    conc = jax.block_until_ready(conc)
    assert conc.shape == x_odd.shape
    assert jnp.allclose(conc, ref(x_odd, bg_scalar), atol=1e-5, rtol=1e-5)

    # --- donated-input path (input_output_aliases) under jit ---
    donate_fn = jax.jit(lambda xv: scmos_forward(xv, bg_scalar, theta, baseline,
                                                 donate_x=True))
    conc, rate = donate_fn(x_f32)
    conc = jax.block_until_ready(conc)
    assert jnp.allclose(conc, ref(x_f32, bg_scalar), atol=1e-5, rtol=1e-5)
    assert jnp.allclose(rate, 1.0 / theta)

    print("KERNEL_OK")
</pallas_src>

<mosaic_0001>
module attributes {stable_mosaic.version = 11 : i64} {
  func.func @_scmos_tensor_bg_kernel(%arg0: i32, %arg1: memref<2xf32, #tpu.memory_space<smem>>, %arg2: memref<8x1024xf32, #tpu.memory_space<vmem>>, %arg3: memref<8x1024xf32, #tpu.memory_space<vmem>>, %arg4: memref<8x1024xf32, #tpu.memory_space<vmem>>) attributes {dimension_semantics = [#tpu.dimension_semantics<parallel>], iteration_bounds = array<i64: 2>, scalar_prefetch = 0 : i64, scratch_operands = 0 : i64, tpu.core_type = #tpu.core_type<tc>, window_params = [{transform_indices = @transform_0, window_bounds = array<i64: 2>}, {transform_indices = @transform_1, window_bounds = array<i64: 8, 1024>}, {transform_indices = @transform_2, window_bounds = array<i64: 8, 1024>}, {transform_indices = @transform_3, window_bounds = array<i64: 8, 1024>}]} {
    %c0 = arith.constant 0 : index
    %0 = memref.load %arg1[%c0] : memref<2xf32, #tpu.memory_space<smem>>
    %c1 = arith.constant 1 : index
    %1 = memref.load %arg1[%c1] : memref<2xf32, #tpu.memory_space<smem>>
    %c0_0 = arith.constant 0 : index
    %c0_1 = arith.constant 0 : index
    %2 = vector.load %arg2[%c0_0, %c0_1] : memref<8x1024xf32, #tpu.memory_space<vmem>>, vector<8x1024xf32>
    %c0_2 = arith.constant 0 : index
    %c0_3 = arith.constant 0 : index
    %3 = vector.load %arg3[%c0_2, %c0_3] : memref<8x1024xf32, #tpu.memory_space<vmem>>, vector<8x1024xf32>
    %4 = arith.addf %2, %3 : vector<8x1024xf32>
    %cst = arith.constant 1.000000e+00 : f32
    %5 = vector.broadcast %cst : f32 to vector<8x1024xf32>
    %6 = arith.maximumf %4, %5 : vector<8x1024xf32>
    %7 = vector.broadcast %0 : f32 to vector<8x1024xf32>
    %8 = arith.subf %6, %7 : vector<8x1024xf32>
    %9 = vector.broadcast %1 : f32 to vector<8x1024xf32>
    %10 = arith.divf %8, %9 : vector<8x1024xf32>
    %c0_4 = arith.constant 0 : index
    %c0_5 = arith.constant 0 : index
    %11 = vector.load %arg4[%c0_4, %c0_5] : memref<8x1024xf32, #tpu.memory_space<vmem>>, vector<8x1024xf32>
    tpu.vector_store %arg4[%c0_4, %c0_5], %10 {strides = array<i32>} : memref<8x1024xf32, #tpu.memory_space<vmem>>, vector<8x1024xf32>,
    return
  }
  func.func @transform_0(%arg0: i32) -> i32 {
    %c0_i32 = arith.constant 0 : i32
    %c0_i32_0 = arith.constant 0 : i32
    return %c0_i32 : i32
  }
  func.func @transform_1(%arg0: i32) -> (i32, i32) {
    %c0_i32 = arith.constant 0 : i32
    %c0_i32_0 = arith.constant 0 : i32
    return %arg0, %c0_i32 : i32, i32
  }
  func.func @transform_2(%arg0: i32) -> (i32, i32) {
    %c0_i32 = arith.constant 0 : i32
    %c0_i32_0 = arith.constant 0 : i32
    return %arg0, %c0_i32 : i32, i32
  }
  func.func @transform_3(%arg0: i32) -> (i32, i32) {
    %c0_i32 = arith.constant 0 : i32
    %c0_i32_0 = arith.constant 0 : i32
    return %arg0, %c0_i32 : i32, i32
  }
}

</mosaic_0001>

<llo_original>
// kernel: tpu_custom_call.1
$region0: #{tpu_custom_call.1}
  #allocation0 [shape = 'u32[]', space=smem, size = 0x4, offset = 0x4, fixed_abs, tag = 'smem constant byte address 0x4 - core index']
  #allocation1 [shape = 'u32[144,128]{1,0:T(1,128)}', space=vmem, size = 0x12000, scoped, tag = 'internal scratch']
  %s0 = inlined_call_operand.hbm [shape: f32[2], index: 0, kind: input, shape index: {}]
  %s1 = inlined_call_operand.hbm [shape: f32[16,1024], index: 1, kind: input, shape index: {}]
  %s2 = inlined_call_operand.hbm [shape: f32[16,1024], index: 2, kind: input, shape index: {}]
  %s3 = inlined_call_operand.hbm [shape: f32[16,1024], index: 3, kind: output, shape index: {}]
  %s4 = sld [smem:[#allocation0]]
  $region57: #{tpu_custom_call.1} parent=0
    _
  %s6 = ssub.s32 1, %s4
  %s7 = scalar_select 0, %s6, %s4
  $region1: #{tpu_custom_call.1} parent=0
    #allocation2 [shape = 'u8[512]{0}', space=smem, size = 0x200, scoped, tag = 'input window, operand 0, single buffered']
    #allocation3 [shape = 's32[2]{0}', space=sflag, size = 0x8, scoped, tag = 'scoped memory for tpu_custom_call.1']
    #allocation4 [shape = 's32[2]{0}', space=sflag, size = 0x8, scoped, tag = 'scoped memory for tpu_custom_call.1']
    #allocation5 [shape = 's32[2]{0}', space=sflag, size = 0x8, scoped, tag = 'scoped memory for tpu_custom_call.1']
    #allocation6 [shape = 'u8[65536]{0}', space=vmem, size = 0x10000, scoped, tag = 'input window, operand 1']
    #allocation7 [shape = 'u8[65536]{0}', space=vmem, size = 0x10000, scoped, tag = 'input window, operand 2']
    #allocation8 [shape = 's32[2]{0}', space=sflag, size = 0x8, scoped, tag = 'scoped memory for tpu_custom_call.1']
    #allocation9 [shape = 'u8[65536]{0}', space=vmem, size = 0x10000, scoped, tag = 'output window, operand 0']
    %8 = vsyncpa [#allocation5], 0
    %9 = vsyncpa [#allocation3], 0
    %s10 = scalar_lea.sflag [#allocation3], 1
    %11 = vsyncpa %s10, 0
    %12 = vsyncpa [#allocation8], 0
    %s13 = scalar_lea.sflag [#allocation8], 1
    %14 = vsyncpa %s13, 0
    %15 = vsyncpa [#allocation4], 0
    %s16 = scalar_lea.sflag [#allocation4], 1
    %17 = vsyncpa %s16, 0
    loop: start=0, step=1, limit=4
    $region2: #{tpu_custom_call.1} parent=1 // loop_pre_header
      _
    $region3: #{tpu_custom_call.1} parent=1 // loop_header
      %s19 = sphi 0, %s23
      %p20 = scmp.ge.s32.totalorder %s19, 4
      %s27 = sphi 0, %s27
      %s29 = sphi 0, %s27
      %s30 = sphi 0, %s29
      %s44 = sphi 0, %s30
      %s50 = sphi 0, %s52
      %s53 = sphi 0, %s50
      %s54 = sphi 0, %s53
      %s70 = sphi 0, %s54
      %s76 = sphi 0, %s78
      %s79 = sphi 0, %s76
      %s80 = sphi 0, %s79
      %s96 = sphi 0, %s80
      %s102 = sphi 0, %s104
      %s105 = sphi 0, %s102
      %s106 = sphi 0, %s105
      %s122 = sphi 0, %s106
    $region4: #{tpu_custom_call.1} parent=1 // loop_header_branch
      %22 = sbr.rel (%p20) target = $region8
    $region5: #{tpu_custom_call.1} parent=1 // loop_body
      %s24 = ssub.s32 %s19, 1
      %s25 = ssub.s32 %s19, 2
      %s26 = sadd.s32 %s19, 1
      %s28 = sadd.s32 %s27, 1
      %p31 = scmp.eq.s32.totalorder %s19, 1
      %p32 = scmp.ne.s32.totalorder %s27, %s29
      %p33 = scmp.eq.s32.totalorder %s19, 0
      %p34 = por %p32, %p33
      %p35 = scmp.ne.s32.totalorder %s27, %s29
      %p36 = scmp.eq.s32.totalorder %s24, 1
      %p37 = por %p35, %p36
      %p38 = scmp.ne.s32.totalorder %s29, %s30
      %p39 = scmp.eq.s32.totalorder %s24, 0
      %p40 = por %p38, %p39
      %p41 = scmp.ne.s32.totalorder %s29, %s30
      %p42 = scmp.eq.s32.totalorder %s25, 1
      %p43 = por %p41, %p42
      %p45 = scmp.ne.s32.totalorder %s30, %s44
      %p46 = scmp.eq.s32.totalorder %s25, 0
      %p47 = por %p45, %p46
      %s48 = ssub.s32 %s19, %s26
      %p49 = scmp.eq.s32.totalorder %s48, 0
      %s51 = sadd.s32 %s50, 1
      %s52 = scalar_select %p49, %s50, %s51
      %p55 = pneg %p49
      %p56 = scmp.eq.s32.totalorder %s19, 1
      %p57 = por %p55, %p56
      %p58 = scmp.ne.s32.totalorder %s50, %s53
      %p59 = scmp.eq.s32.totalorder %s19, 0
      %p60 = por %p58, %p59
      %p61 = scmp.ne.s32.totalorder %s50, %s53
      %p62 = scmp.eq.s32.totalorder %s24, 1
      %p63 = por %p61, %p62
      %p64 = scmp.ne.s32.totalorder %s53, %s54
      %p65 = scmp.eq.s32.totalorder %s24, 0
      %p66 = por %p64, %p65
      %p67 = scmp.ne.s32.totalorder %s53, %s54
      %p68 = scmp.eq.s32.totalorder %s25, 1
      %p69 = por %p67, %p68
      %p71 = scmp.ne.s32.totalorder %s54, %s70
      %p72 = scmp.eq.s32.totalorder %s25, 0
      %p73 = por %p71, %p72
      %s74 = ssub.s32 %s19, %s26
      %p75 = scmp.eq.s32.totalorder %s74, 0
      %s77 = sadd.s32 %s76, 1
      %s78 = scalar_select %p75, %s76, %s77
      %p81 = pneg %p75
      %p82 = scmp.eq.s32.totalorder %s19, 1
      %p83 = por %p81, %p82
      %p84 = scmp.ne.s32.totalorder %s76, %s79
      %p85 = scmp.eq.s32.totalorder %s19, 0
      %p86 = por %p84, %p85
      %p87 = scmp.ne.s32.totalorder %s76, %s79
      %p88 = scmp.eq.s32.totalorder %s24, 1
      %p89 = por %p87, %p88
      %p90 = scmp.ne.s32.totalorder %s79, %s80
      %p91 = scmp.eq.s32.totalorder %s24, 0
      %p92 = por %p90, %p91
      %p93 = scmp.ne.s32.totalorder %s79, %s80
      %p94 = scmp.eq.s32.totalorder %s25, 1
      %p95 = por %p93, %p94
      %p97 = scmp.ne.s32.totalorder %s80, %s96
      %p98 = scmp.eq.s32.totalorder %s25, 0
      %p99 = por %p97, %p98
      %s100 = ssub.s32 %s19, %s26
      %p101 = scmp.eq.s32.totalorder %s100, 0
      %s103 = sadd.s32 %s102, 1
      %s104 = scalar_select %p101, %s102, %s103
      %p107 = pneg %p101
      %p108 = scmp.eq.s32.totalorder %s19, 1
      %p109 = por %p107, %p108
      %p110 = scmp.ne.s32.totalorder %s102, %s105
      %p111 = scmp.eq.s32.totalorder %s19, 0
      %p112 = por %p110, %p111
      %p113 = scmp.ne.s32.totalorder %s102, %s105
      %p114 = scmp.eq.s32.totalorder %s24, 1
      %p115 = por %p113, %p114
      %p116 = scmp.ne.s32.totalorder %s105, %s106
      %p117 = scmp.eq.s32.totalorder %s24, 0
      %p118 = por %p116, %p117
      %p119 = scmp.ne.s32.totalorder %s105, %s106
      %p120 = scmp.eq.s32.totalorder %s25, 1
      %p121 = por %p119, %p120
      %p123 = scmp.ne.s32.totalorder %s106, %s122
      %p124 = scmp.eq.s32.totalorder %s25, 0
      %p125 = por %p123, %p124
      %p126 = scmp.le.s32.totalorder 1, %s19
      %p127 = scmp.lt.s32.totalorder %s19, 3
      %p128 = pnand %p126, %p127
      %p129 = pneg %p128
      // Predicated region
      $region9: #{tpu_custom_call.1} parent=5 // pred_check
        _
      $region10: #{tpu_custom_call.1} parent=5 // pred_check_branch
        %131 = sbr.rel (%p128) target = $region12
      $region11: #{tpu_custom_call.1} parent=5 // pred_region
        %s132 = ssub.s32 %s19, 1
        // Predicated region
        $region13: #{tpu_custom_call.1} parent=11 // pred_check
          %p133 = pneg %p40
        $region14: #{tpu_custom_call.1} parent=11 // pred_check_branch
          %135 = sbr.rel (%p133) target = $region16
        $region15: #{tpu_custom_call.1} parent=11 // pred_region
          %s137 = ssub.s32 16, 16
          %138 = vsyncadd [#allocation5], %s137
          %141 = dma.hbm_to_smem %s0, 16, [#allocation2], [#allocation5]
        $region16: #{tpu_custom_call.1} parent=11 // pred_fallthru
          _
      $region12: #{tpu_custom_call.1} parent=5 // pred_fallthru
        _
      %p142 = scmp.lt.s32.totalorder %s19, 2
      // Predicated region
      $region17: #{tpu_custom_call.1} parent=5 // pred_check
        %p143 = pneg %p142
      $region18: #{tpu_custom_call.1} parent=5 // pred_check_branch
        %145 = sbr.rel (%p143) target = $region20
      $region19: #{tpu_custom_call.1} parent=5 // pred_region
        // Predicated region
        $region21: #{tpu_custom_call.1} parent=19 // pred_check
          %p146 = pneg %p60
        $region22: #{tpu_custom_call.1} parent=19 // pred_check_branch
          %148 = sbr.rel (%p146) target = $region24
        $region23: #{tpu_custom_call.1} parent=19 // pred_region
          %s149 = sand.u32 %s50, 1
          %s150 = scalar_lea.sflag [#allocation3], %s149
          %s151 = sand.u32 %s50, 1
          %s152 = smul.addr %s151, 64
          %s153 = scalar_lea.vmem [#allocation6], %s152
          %s155 = ssub.s32 1024, 1024
          %156 = vsyncadd %s150, %s155
          %s157 = smul.addr %s19, 8
          %s158 = smul.addr %s157, 128
          %s159 = scalar_lea.hbm %s1, %s158
          %s161 = sshll.u32 %s153, 4
          %s162 = int_to_ptr.vmem [resolvable:$true] %s161
          %164 = dma.hbm_to_vmem [thread:$0]  %s159, 1024, %s162, %s150
        $region24: #{tpu_custom_call.1} parent=19 // pred_fallthru
          _
        // Predicated region
        $region25: #{tpu_custom_call.1} parent=19 // pred_check
          %p165 = pneg %p86
        $region26: #{tpu_custom_call.1} parent=19 // pred_check_branch
          %167 = sbr.rel (%p165) target = $region28
        $region27: #{tpu_custom_call.1} parent=19 // pred_region
          %s168 = sand.u32 %s76, 1
          %s169 = scalar_lea.sflag [#allocation8], %s168
          %s170 = sand.u32 %s76, 1
          %s171 = smul.addr %s170, 64
          %s172 = scalar_lea.vmem [#allocation7], %s171
          %s174 = ssub.s32 1024, 1024
          %175 = vsyncadd %s169, %s174
          %s176 = smul.addr %s19, 8
          %s177 = smul.addr %s176, 128
          %s178 = scalar_lea.hbm %s2, %s177
          %s180 = sshll.u32 %s172, 4
          %s181 = int_to_ptr.vmem [resolvable:$true] %s180
          %183 = dma.hbm_to_vmem [thread:$0]  %s178, 1024, %s181, %s169
        $region28: #{tpu_custom_call.1} parent=19 // pred_fallthru
          _
      $region20: #{tpu_custom_call.1} parent=5 // pred_fallthru
        _
      %p184 = scmp.le.s32.totalorder 1, %s19
      %p185 = scmp.lt.s32.totalorder %s19, 3
      %p186 = pnand %p184, %p185
      %p187 = pneg %p186
      // Predicated region
      $region29: #{tpu_custom_call.1} parent=5 // pred_check
        _
      $region30: #{tpu_custom_call.1} parent=5 // pred_check_branch
        %189 = sbr.rel (%p186) target = $region32
      $region31: #{tpu_custom_call.1} parent=5 // pred_region
        %s190 = ssub.s32 %s19, 1
        // Predicated region
        $region33: #{tpu_custom_call.1} parent=31 // pred_check
          %p191 = pneg %p40
        $region34: #{tpu_custom_call.1} parent=31 // pred_check_branch
          %193 = sbr.rel (%p191) target = $region36
        $region35: #{tpu_custom_call.1} parent=31 // pred_region
          %194 = dma.done [#allocation5], 16
        $region36: #{tpu_custom_call.1} parent=31 // pred_fallthru
          _
        %s195 = sand.u32 %s53, 1
        %s196 = scalar_lea.sflag [#allocation3], %s195
        %s197 = sand.u32 %s53, 1
        %s198 = smul.addr %s197, 64
        %s199 = scalar_lea.vmem [#allocation6], %s198
        // Predicated region
        $region37: #{tpu_custom_call.1} parent=31 // pred_check
          %p200 = pneg %p66
        $region38: #{tpu_custom_call.1} parent=31 // pred_check_branch
          %202 = sbr.rel (%p200) target = $region40
        $region39: #{tpu_custom_call.1} parent=31 // pred_region
          %203 = dma.done %s196, 1024
        $region40: #{tpu_custom_call.1} parent=31 // pred_fallthru
          _
        %s204 = sand.u32 %s79, 1
        %s205 = scalar_lea.sflag [#allocation8], %s204
        %s206 = sand.u32 %s79, 1
        %s207 = smul.addr %s206, 64
        %s208 = scalar_lea.vmem [#allocation7], %s207
        // Predicated region
        $region41: #{tpu_custom_call.1} parent=31 // pred_check
          %p209 = pneg %p92
        $region42: #{tpu_custom_call.1} parent=31 // pred_check_branch
          %211 = sbr.rel (%p209) target = $region44
        $region43: #{tpu_custom_call.1} parent=31 // pred_region
          %212 = dma.done %s205, 1024
        $region44: #{tpu_custom_call.1} parent=31 // pred_fallthru
          _
        %213 = sfence
        %p214 = pneg %p40
        %p215 = pneg %p37
        %s216 = sand.u32 %s53, 1
        %s217 = scalar_lea.sflag [#allocation3], %s216
        %s218 = sand.u32 %s53, 1
        %s219 = smul.addr %s218, 64
        %s220 = scalar_lea.vmem [#allocation6], %s219
        %p221 = pneg %p66
        %p222 = pneg %p63
        %s223 = sand.u32 %s79, 1
        %s224 = scalar_lea.sflag [#allocation8], %s223
        %s225 = sand.u32 %s79, 1
        %s226 = smul.addr %s225, 64
        %s227 = scalar_lea.vmem [#allocation7], %s226
        %p228 = pneg %p92
        %p229 = pneg %p89
        %p230 = pneg %p118
        %p231 = pneg %p115
        %s232 = sand.u32 %s105, 1
        %s233 = scalar_lea.sflag [#allocation4], %s232
        %s234 = sand.u32 %s105, 1
        %s235 = smul.addr %s234, 64
        %s236 = scalar_lea.vmem [#allocation9], %s235
        %s237 = sld [smem:[#allocation2]]
        %s238 = sld [smem:[#allocation2 + $0x1]]
        %v239 = vld [vmem:[%s199] sm:$0xff]
        %v240 = vld [vmem:[%s199 + $0x8] sm:$0xff]
        %v241 = vld [vmem:[%s199 + $0x10] sm:$0xff]
        %v242 = vld [vmem:[%s199 + $0x18] sm:$0xff]
        %v243 = vld [vmem:[%s199 + $0x20] sm:$0xff]
        %v244 = vld [vmem:[%s199 + $0x28] sm:$0xff]
        %v245 = vld [vmem:[%s199 + $0x30] sm:$0xff]
        %v246 = vld [vmem:[%s199 + $0x38] sm:$0xff]
        %v247 = vld [vmem:[%s208] sm:$0xff]
        %v248 = vld [vmem:[%s208 + $0x8] sm:$0xff]
        %v249 = vld [vmem:[%s208 + $0x10] sm:$0xff]
        %v250 = vld [vmem:[%s208 + $0x18] sm:$0xff]
        %v251 = vld [vmem:[%s208 + $0x20] sm:$0xff]
        %v252 = vld [vmem:[%s208 + $0x28] sm:$0xff]
        %v253 = vld [vmem:[%s208 + $0x30] sm:$0xff]
        %v254 = vld [vmem:[%s208 + $0x38] sm:$0xff]
        %v255 = vadd.f32 %v239, %v247
        %v256 = vadd.f32 %v240, %v248
        %v257 = vadd.f32 %v241, %v249
        %v258 = vadd.f32 %v242, %v250
        %v259 = vadd.f32 %v243, %v251
        %v260 = vadd.f32 %v244, %v252
        %v261 = vadd.f32 %v245, %v253
        %v262 = vadd.f32 %v246, %v254
        %v263 = vmax.f32 %v255, 1.0
        %v264 = vmax.f32 %v256, 1.0
        %v265 = vmax.f32 %v257, 1.0
        %v266 = vmax.f32 %v258, 1.0
        %v267 = vmax.f32 %v259, 1.0
        %v268 = vmax.f32 %v260, 1.0
        %v269 = vmax.f32 %v261, 1.0
        %v270 = vmax.f32 %v262, 1.0
        %v271 = vstv %s237
        %v272 = vsub.f32 %v263, %v271
        %v273 = vsub.f32 %v264, %v271
        %v274 = vsub.f32 %v265, %v271
        %v275 = vsub.f32 %v266, %v271
        %v276 = vsub.f32 %v267, %v271
        %v277 = vsub.f32 %v268, %v271
        %v278 = vsub.f32 %v269, %v271
        %v279 = vsub.f32 %v270, %v271
        %v280 = vstv %s238
        %v281 = vrcp.pop %v280
        %v282 = vmul.f32 %v272, %v281
        %v283 = vmul.f32 %v273, %v281
        %v284 = vmul.f32 %v274, %v281
        %v285 = vmul.f32 %v275, %v281
        %v286 = vmul.f32 %v276, %v281
        %v287 = vmul.f32 %v277, %v281
        %v288 = vmul.f32 %v278, %v281
        %v289 = vmul.f32 %v279, %v281
        %290 = vst [vmem:[%s236] sm:$0xff] %v282
        %291 = vst [vmem:[%s236 + $0x8] sm:$0xff] %v283
        %292 = vst [vmem:[%s236 + $0x10] sm:$0xff] %v284
        %293 = vst [vmem:[%s236 + $0x18] sm:$0xff] %v285
        %294 = vst [vmem:[%s236 + $0x20] sm:$0xff] %v286
        %295 = vst [vmem:[%s236 + $0x28] sm:$0xff] %v287
        %296 = vst [vmem:[%s236 + $0x30] sm:$0xff] %v288
        %297 = vst [vmem:[%s236 + $0x38] sm:$0xff] %v289
        %s298 = sand.u32 %s105, 1
        %s299 = scalar_lea.sflag [#allocation4], %s298
        %s300 = sand.u32 %s105, 1
        %s301 = smul.addr %s300, 64
        %s302 = scalar_lea.vmem [#allocation9], %s301
        // Predicated region
        $region45: #{tpu_custom_call.1} parent=31 // pred_check
          %p303 = pneg %p115
        $region46: #{tpu_custom_call.1} parent=31 // pred_check_branch
          %305 = sbr.rel (%p303) target = $region48
        $region47: #{tpu_custom_call.1} parent=31 // pred_region
          %s307 = ssub.s32 1024, 1024
          %308 = vsyncadd %s299, %s307
          %s309 = smul.addr %s24, 8
          %s310 = smul.addr %s309, 128
          %s311 = scalar_lea.hbm %s3, %s310
          %s313 = sshll.u32 %s302, 4
          %s314 = int_to_ptr.vmem [resolvable:$true] %s313
          %316 = dma.vmem_to_hbm [thread:$0]  %s314, 1024, %s311, %s299
        $region48: #{tpu_custom_call.1} parent=31 // pred_fallthru
          _
      $region32: #{tpu_custom_call.1} parent=5 // pred_fallthru
        _
      %p317 = scmp.le.s32.totalorder 2, %s19
      // Predicated region
      $region49: #{tpu_custom_call.1} parent=5 // pred_check
        %p318 = pneg %p317
      $region50: #{tpu_custom_call.1} parent=5 // pred_check_branch
        %320 = sbr.rel (%p318) target = $region52
      $region51: #{tpu_custom_call.1} parent=5 // pred_region
        %s321 = ssub.s32 %s19, 2
        // Predicated region
        $region53: #{tpu_custom_call.1} parent=51 // pred_check
          %p322 = pneg %p121
        $region54: #{tpu_custom_call.1} parent=51 // pred_check_branch
          %324 = sbr.rel (%p322) target = $region56
        $region55: #{tpu_custom_call.1} parent=51 // pred_region
          %s325 = sand.u32 %s106, 1
          %s326 = scalar_lea.sflag [#allocation4], %s325
          %s327 = sand.u32 %s106, 1
          %s328 = smul.addr %s327, 64
          %s329 = scalar_lea.vmem [#allocation9], %s328
          %330 = dma.done %s326, 1024
        $region56: #{tpu_custom_call.1} parent=51 // pred_fallthru
          _
      $region52: #{tpu_custom_call.1} parent=5 // pred_fallthru
        _
    $region6: #{tpu_custom_call.1} parent=1 // loop_footer
      %s23 = sadd.s32 1, %s19
    $region7: #{tpu_custom_call.1} parent=1 // loop_footer_branch
      %18 = sbr.rel target = $region3
    $region8: #{tpu_custom_call.1} parent=1 // loop_exit
      _
    %331 = vsyncpa [#allocation3], 1
    %s332 = scalar_lea.sflag [#allocation3], 1
    %333 = vsyncpa %s332, 1
    %334 = vsyncpa [#allocation8], 1
    %s335 = scalar_lea.sflag [#allocation8], 1
    %336 = vsyncpa %s335, 1
    %337 = vsyncpa [#allocation4], 1
    %s338 = scalar_lea.sflag [#allocation4], 1
    %339 = vsyncpa %s338, 1
    %340 = vsyncpa [#allocation5], 1
    %s341 = scalar_lea.sflag [#allocation5], 1
    %342 = vsyncpa %s341, 1

</llo_original>
